<compile_context>
chip_gen: v6e
topology: v6e:2x2x1
jax: 0.10.0
libtpu: 0.0.40
codegen_flags: <defaults>
</compile_context>

<pallas_src>
import jax
import jax.numpy as jnp
from jax.experimental import pallas as pl
from jax.experimental.pallas import tpu as pltpu


def _round_up(n, m):
    return ((n + m - 1) // m) * m


def mlp_kernel(x_ref,
               w1_ref, b1_ref,
               w2_ref, b2_ref,
               w3_ref, b3_ref,
               w4_ref, b4_ref,
               w5_ref, b5_ref,
               o_ref):
    # x arrives as f32 from HBM; cast to bf16 in-kernel (VPU work hidden
    # under the input DMA).  All matmuls accumulate in f32 on the MXU;
    # bias-add / ReLU stay in f32, activations re-cast to bf16 only as
    # matmul inputs.
    h = x_ref[...].astype(jnp.bfloat16)

    h = jnp.dot(h, w1_ref[...], preferred_element_type=jnp.float32) + b1_ref[...]
    h = jnp.maximum(h, 0.0).astype(jnp.bfloat16)

    h = jnp.dot(h, w2_ref[...], preferred_element_type=jnp.float32) + b2_ref[...]
    h = jnp.maximum(h, 0.0).astype(jnp.bfloat16)

    h = jnp.dot(h, w3_ref[...], preferred_element_type=jnp.float32) + b3_ref[...]
    h = jnp.maximum(h, 0.0).astype(jnp.bfloat16)

    h = jnp.dot(h, w4_ref[...], preferred_element_type=jnp.float32) + b4_ref[...]
    h = jnp.maximum(h, 0.0).astype(jnp.bfloat16)

    h = jnp.dot(h, w5_ref[...], preferred_element_type=jnp.float32) + b5_ref[...]

    # bf16 store: the output stream is the dominant HBM byte stream.
    o_ref[...] = h.astype(o_ref.dtype)


def prepare_params(params):
    """One-time weight prep (hoisted out of the per-call path).

    params: list of (w [in,out] f32, b [1,out] f32).
    Returns (layers, out_dim) where layers are (w bf16, b f32) with the final
    layer's out-dim padded up to a multiple of 8.
    """
    *hidden, (w_last, b_last) = params
    out_dim = int(w_last.shape[1])
    pad = _round_up(out_dim, 8) - out_dim

    layers = [(jnp.asarray(w, jnp.bfloat16), jnp.asarray(b, jnp.float32))
              for w, b in hidden]
    w_last = jnp.pad(jnp.asarray(w_last, jnp.float32), ((0, 0), (0, pad)))
    b_last = jnp.pad(jnp.asarray(b_last, jnp.float32), ((0, 0), (0, pad)))
    layers.append((w_last.astype(jnp.bfloat16), b_last))
    return layers, out_dim


def mlp_forward(x, prepared, *, tile_b=4096):
    """x: [B, input_dim] float32. prepared: output of prepare_params().

    Returns [B, output_dim] float32 logits.
    """
    layers, out_dim = prepared
    B, D_in = x.shape
    D_out_pad = layers[-1][0].shape[1]

    # ---- batch tiling ------------------------------------------------------
    tile_b = int(tile_b)
    # v7x megacore: make sure the "parallel" grid has >= 2 steps when the
    # batch is big enough to be worth splitting across both TensorCores.
    if B >= 512 and B < 2 * tile_b:
        tile_b = _round_up(-(-B // 2), 8)
    tile_b = max(8, min(tile_b, _round_up(B, 8)))
    tile_b = _round_up(tile_b, 8)
    grid = (pl.cdiv(B, tile_b),)  # ragged last tile handled by Pallas clamping

    # ---- BlockSpecs --------------------------------------------------------
    # Weights/biases: full block, constant index_map -> stay VMEM-resident
    # across the whole batch loop (no per-step re-DMA).
    def const_spec(shape):
        return pl.BlockSpec(shape, lambda i: (0, 0))

    in_specs = [pl.BlockSpec((tile_b, D_in), lambda i: (i, 0))]
    flat_args = [x]
    for w, b in layers:
        in_specs.append(const_spec(w.shape))
        flat_args.append(w)
        in_specs.append(const_spec(b.shape))
        flat_args.append(b)

    out_spec = pl.BlockSpec((tile_b, D_out_pad), lambda i: (i, 0))

    # ---- advisory cost estimate -------------------------------------------
    dims = [D_in] + [w.shape[1] for w, _ in layers]
    flops_per_row = 2 * sum(dims[i] * dims[i + 1] for i in range(len(dims) - 1))
    weight_bytes = sum(w.size * w.dtype.itemsize + b.size * b.dtype.itemsize
                       for w, b in layers)
    cost = pl.CostEstimate(
        flops=B * flops_per_row,
        transcendentals=0,
        bytes_accessed=B * (D_in * x.dtype.itemsize + D_out_pad * 2) + weight_bytes,
    )

    out = pl.pallas_call(
        mlp_kernel,
        out_shape=jax.ShapeDtypeStruct((B, D_out_pad), jnp.bfloat16),
        grid_spec=pltpu.PrefetchScalarGridSpec(
            num_scalar_prefetch=0,
            grid=grid,
            in_specs=in_specs,
            out_specs=out_spec,
        ),
        compiler_params=pltpu.CompilerParams(
            dimension_semantics=("parallel",),
        ),
        cost_estimate=cost,
    )(*flat_args)

    return out[:, :out_dim].astype(jnp.float32)


def init_params(key, input_dim, output_dim):
    """Deterministic init mirroring nn.Linear shapes (stored as [in, out])."""
    dims = [input_dim, 64, 32, 32, 16, output_dim]
    params = []
    for i in range(5):
        key, kw, kb = jax.random.split(key, 3)
        fan_in, fan_out = dims[i], dims[i + 1]
        bound = 1.0 / jnp.sqrt(fan_in)
        w = jax.random.uniform(kw, (fan_in, fan_out), jnp.float32, -bound, bound)
        # bias kept 2D [1, out] for TPU-friendly broadcasting inside the kernel
        b = jax.random.uniform(kb, (1, fan_out), jnp.float32, -bound, bound)
        params.append((w, b))
    return params


def mlp_reference(x, params):
    """Pure-JAX reference mimicking the kernel numerics (bf16 matmul inputs,
    f32 accumulation, bf16 final store)."""
    h = x.astype(jnp.bfloat16)
    n = len(params)
    for idx, (w, b) in enumerate(params):
        h = jnp.dot(h, w.astype(jnp.bfloat16),
                    preferred_element_type=jnp.float32) + b
        if idx < n - 1:
            h = jnp.maximum(h, 0.0).astype(jnp.bfloat16)
    return h.astype(jnp.bfloat16).astype(jnp.float32)


if __name__ == "__main__":
    key = jax.random.PRNGKey(0)
    k_x, k_p = jax.random.split(key)

    input_dim = 64    # sklearn digits: 8x8 flattened
    output_dim = 10   # 10 digit classes
    batch = 8

    x = jax.random.normal(k_x, (batch, input_dim), jnp.float32)
    params = init_params(k_p, input_dim, output_dim)
    prepared = prepare_params(params)  # one-time weight prep (hoisted)

    out = mlp_forward(x, prepared)
    out = jax.block_until_ready(out)

    ref = mlp_reference(x, params)
    assert out.shape == (batch, output_dim)
    assert jnp.allclose(out, ref, atol=1e-2, rtol=1e-2), "mismatch vs reference"

    print("KERNEL_OK")
</pallas_src>

<mosaic_0001>
module attributes {stable_mosaic.version = 11 : i64} {
  func.func @mlp_kernel(%arg0: i32, %arg1: memref<8x64xf32, #tpu.memory_space<vmem>>, %arg2: memref<64x64xbf16, #tpu.memory_space<vmem>>, %arg3: memref<1x64xf32, #tpu.memory_space<vmem>>, %arg4: memref<64x32xbf16, #tpu.memory_space<vmem>>, %arg5: memref<1x32xf32, #tpu.memory_space<vmem>>, %arg6: memref<32x32xbf16, #tpu.memory_space<vmem>>, %arg7: memref<1x32xf32, #tpu.memory_space<vmem>>, %arg8: memref<32x16xbf16, #tpu.memory_space<vmem>>, %arg9: memref<1x16xf32, #tpu.memory_space<vmem>>, %arg10: memref<16x16xbf16, #tpu.memory_space<vmem>>, %arg11: memref<1x16xf32, #tpu.memory_space<vmem>>, %arg12: memref<8x16xbf16, #tpu.memory_space<vmem>>) attributes {dimension_semantics = [#tpu.dimension_semantics<parallel>], iteration_bounds = array<i64: 1>, scalar_prefetch = 0 : i64, scratch_operands = 0 : i64, tpu.core_type = #tpu.core_type<tc>, window_params = [{transform_indices = @transform_0, window_bounds = array<i64: 8, 64>}, {pipeline_mode = #tpu.pipeline_mode<synchronous>, transform_indices = @transform_1, window_bounds = array<i64: 64, 64>}, {pipeline_mode = #tpu.pipeline_mode<synchronous>, transform_indices = @transform_2, window_bounds = array<i64: 1, 64>}, {pipeline_mode = #tpu.pipeline_mode<synchronous>, transform_indices = @transform_3, window_bounds = array<i64: 64, 32>}, {pipeline_mode = #tpu.pipeline_mode<synchronous>, transform_indices = @transform_4, window_bounds = array<i64: 1, 32>}, {pipeline_mode = #tpu.pipeline_mode<synchronous>, transform_indices = @transform_5, window_bounds = array<i64: 32, 32>}, {pipeline_mode = #tpu.pipeline_mode<synchronous>, transform_indices = @transform_6, window_bounds = array<i64: 1, 32>}, {pipeline_mode = #tpu.pipeline_mode<synchronous>, transform_indices = @transform_7, window_bounds = array<i64: 32, 16>}, {pipeline_mode = #tpu.pipeline_mode<synchronous>, transform_indices = @transform_8, window_bounds = array<i64: 1, 16>}, {pipeline_mode = #tpu.pipeline_mode<synchronous>, transform_indices = @transform_9, window_bounds = array<i64: 16, 16>}, {pipeline_mode = #tpu.pipeline_mode<synchronous>, transform_indices = @transform_10, window_bounds = array<i64: 1, 16>}, {transform_indices = @transform_11, window_bounds = array<i64: 8, 16>}]} {
    %c0 = arith.constant 0 : index
    %c0_0 = arith.constant 0 : index
    %0 = vector.load %arg1[%c0, %c0_0] : memref<8x64xf32, #tpu.memory_space<vmem>>, vector<8x64xf32>
    %1 = arith.truncf %0 : vector<8x64xf32> to vector<8x64xbf16>
    %c0_1 = arith.constant 0 : index
    %c0_2 = arith.constant 0 : index
    %2 = vector.load %arg2[%c0_1, %c0_2] : memref<64x64xbf16, #tpu.memory_space<vmem>>, vector<64x64xbf16>
    %cst = arith.constant dense<0.000000e+00> : vector<8x64xf32>
    %3 = tpu.matmul %1, %2, %cst {dimension_numbers = #tpu.dot_dimension_numbers<[1], [0], [0], [1], [0, 0, 1, 1], [], []>} : vector<8x64xbf16>, vector<64x64xbf16>, vector<8x64xf32> -> vector<8x64xf32>
    %c0_3 = arith.constant 0 : index
    %c0_4 = arith.constant 0 : index
    %4 = vector.load %arg3[%c0_3, %c0_4] : memref<1x64xf32, #tpu.memory_space<vmem>>, vector<1x64xf32>
    %5 = vector.broadcast %4 : vector<1x64xf32> to vector<8x64xf32>
    %6 = arith.addf %3, %5 : vector<8x64xf32>
    %cst_5 = arith.constant 0.000000e+00 : f32
    %7 = vector.broadcast %cst_5 : f32 to vector<8x64xf32>
    %8 = arith.maximumf %6, %7 : vector<8x64xf32>
    %9 = arith.truncf %8 : vector<8x64xf32> to vector<8x64xbf16>
    %c0_6 = arith.constant 0 : index
    %c0_7 = arith.constant 0 : index
    %10 = vector.load %arg4[%c0_6, %c0_7] : memref<64x32xbf16, #tpu.memory_space<vmem>>, vector<64x32xbf16>
    %cst_8 = arith.constant dense<0.000000e+00> : vector<8x32xf32>
    %11 = tpu.matmul %9, %10, %cst_8 {dimension_numbers = #tpu.dot_dimension_numbers<[1], [0], [0], [1], [0, 0, 1, 1], [], []>} : vector<8x64xbf16>, vector<64x32xbf16>, vector<8x32xf32> -> vector<8x32xf32>
    %c0_9 = arith.constant 0 : index
    %c0_10 = arith.constant 0 : index
    %12 = vector.load %arg5[%c0_9, %c0_10] : memref<1x32xf32, #tpu.memory_space<vmem>>, vector<1x32xf32>
    %13 = vector.broadcast %12 : vector<1x32xf32> to vector<8x32xf32>
    %14 = arith.addf %11, %13 : vector<8x32xf32>
    %cst_11 = arith.constant 0.000000e+00 : f32
    %15 = vector.broadcast %cst_11 : f32 to vector<8x32xf32>
    %16 = arith.maximumf %14, %15 : vector<8x32xf32>
    %17 = arith.truncf %16 : vector<8x32xf32> to vector<8x32xbf16>
    %c0_12 = arith.constant 0 : index
    %c0_13 = arith.constant 0 : index
    %18 = vector.load %arg6[%c0_12, %c0_13] : memref<32x32xbf16, #tpu.memory_space<vmem>>, vector<32x32xbf16>
    %cst_14 = arith.constant dense<0.000000e+00> : vector<8x32xf32>
    %19 = tpu.matmul %17, %18, %cst_14 {dimension_numbers = #tpu.dot_dimension_numbers<[1], [0], [0], [1], [0, 0, 1, 1], [], []>} : vector<8x32xbf16>, vector<32x32xbf16>, vector<8x32xf32> -> vector<8x32xf32>
    %c0_15 = arith.constant 0 : index
    %c0_16 = arith.constant 0 : index
    %20 = vector.load %arg7[%c0_15, %c0_16] : memref<1x32xf32, #tpu.memory_space<vmem>>, vector<1x32xf32>
    %21 = vector.broadcast %20 : vector<1x32xf32> to vector<8x32xf32>
    %22 = arith.addf %19, %21 : vector<8x32xf32>
    %cst_17 = arith.constant 0.000000e+00 : f32
    %23 = vector.broadcast %cst_17 : f32 to vector<8x32xf32>
    %24 = arith.maximumf %22, %23 : vector<8x32xf32>
    %25 = arith.truncf %24 : vector<8x32xf32> to vector<8x32xbf16>
    %c0_18 = arith.constant 0 : index
    %c0_19 = arith.constant 0 : index
    %26 = vector.load %arg8[%c0_18, %c0_19] : memref<32x16xbf16, #tpu.memory_space<vmem>>, vector<32x16xbf16>
    %cst_20 = arith.constant dense<0.000000e+00> : vector<8x16xf32>
    %27 = tpu.matmul %25, %26, %cst_20 {dimension_numbers = #tpu.dot_dimension_numbers<[1], [0], [0], [1], [0, 0, 1, 1], [], []>} : vector<8x32xbf16>, vector<32x16xbf16>, vector<8x16xf32> -> vector<8x16xf32>
    %c0_21 = arith.constant 0 : index
    %c0_22 = arith.constant 0 : index
    %28 = vector.load %arg9[%c0_21, %c0_22] : memref<1x16xf32, #tpu.memory_space<vmem>>, vector<1x16xf32>
    %29 = vector.broadcast %28 : vector<1x16xf32> to vector<8x16xf32>
    %30 = arith.addf %27, %29 : vector<8x16xf32>
    %cst_23 = arith.constant 0.000000e+00 : f32
    %31 = vector.broadcast %cst_23 : f32 to vector<8x16xf32>
    %32 = arith.maximumf %30, %31 : vector<8x16xf32>
    %33 = arith.truncf %32 : vector<8x16xf32> to vector<8x16xbf16>
    %c0_24 = arith.constant 0 : index
    %c0_25 = arith.constant 0 : index
    %34 = vector.load %arg10[%c0_24, %c0_25] : memref<16x16xbf16, #tpu.memory_space<vmem>>, vector<16x16xbf16>
    %cst_26 = arith.constant dense<0.000000e+00> : vector<8x16xf32>
    %35 = tpu.matmul %33, %34, %cst_26 {dimension_numbers = #tpu.dot_dimension_numbers<[1], [0], [0], [1], [0, 0, 1, 1], [], []>} : vector<8x16xbf16>, vector<16x16xbf16>, vector<8x16xf32> -> vector<8x16xf32>
    %c0_27 = arith.constant 0 : index
    %c0_28 = arith.constant 0 : index
    %36 = vector.load %arg11[%c0_27, %c0_28] : memref<1x16xf32, #tpu.memory_space<vmem>>, vector<1x16xf32>
    %37 = vector.broadcast %36 : vector<1x16xf32> to vector<8x16xf32>
    %38 = arith.addf %35, %37 : vector<8x16xf32>
    %39 = arith.truncf %38 : vector<8x16xf32> to vector<8x16xbf16>
    %c0_29 = arith.constant 0 : index
    %c0_30 = arith.constant 0 : index
    %40 = vector.load %arg12[%c0_29, %c0_30] : memref<8x16xbf16, #tpu.memory_space<vmem>>, vector<8x16xbf16>
    tpu.vector_store %arg12[%c0_29, %c0_30], %39 {strides = array<i32>} : memref<8x16xbf16, #tpu.memory_space<vmem>>, vector<8x16xbf16>,
    return
  }
  func.func @transform_0(%arg0: i32) -> (i32, i32) {
    %c0_i32 = arith.constant 0 : i32
    %c0_i32_0 = arith.constant 0 : i32
    return %arg0, %c0_i32 : i32, i32
  }
  func.func @transform_1(%arg0: i32) -> (i32, i32) {
    %c0_i32 = arith.constant 0 : i32
    %c0_i32_0 = arith.constant 0 : i32
    %c0_i32_1 = arith.constant 0 : i32
    return %c0_i32, %c0_i32_0 : i32, i32
  }
  func.func @transform_2(%arg0: i32) -> (i32, i32) {
    %c0_i32 = arith.constant 0 : i32
    %c0_i32_0 = arith.constant 0 : i32
    %c0_i32_1 = arith.constant 0 : i32
    return %c0_i32, %c0_i32_0 : i32, i32
  }
  func.func @transform_3(%arg0: i32) -> (i32, i32) {
    %c0_i32 = arith.constant 0 : i32
    %c0_i32_0 = arith.constant 0 : i32
    %c0_i32_1 = arith.constant 0 : i32
    return %c0_i32, %c0_i32_0 : i32, i32
  }
  func.func @transform_4(%arg0: i32) -> (i32, i32) {
    %c0_i32 = arith.constant 0 : i32
    %c0_i32_0 = arith.constant 0 : i32
    %c0_i32_1 = arith.constant 0 : i32
    return %c0_i32, %c0_i32_0 : i32, i32
  }
  func.func @transform_5(%arg0: i32) -> (i32, i32) {
    %c0_i32 = arith.constant 0 : i32
    %c0_i32_0 = arith.constant 0 : i32
    %c0_i32_1 = arith.constant 0 : i32
    return %c0_i32, %c0_i32_0 : i32, i32
  }
  func.func @transform_6(%arg0: i32) -> (i32, i32) {
    %c0_i32 = arith.constant 0 : i32
    %c0_i32_0 = arith.constant 0 : i32
    %c0_i32_1 = arith.constant 0 : i32
    return %c0_i32, %c0_i32_0 : i32, i32
  }
  func.func @transform_7(%arg0: i32) -> (i32, i32) {
    %c0_i32 = arith.constant 0 : i32
    %c0_i32_0 = arith.constant 0 : i32
    %c0_i32_1 = arith.constant 0 : i32
    return %c0_i32, %c0_i32_0 : i32, i32
  }
  func.func @transform_8(%arg0: i32) -> (i32, i32) {
    %c0_i32 = arith.constant 0 : i32
    %c0_i32_0 = arith.constant 0 : i32
    %c0_i32_1 = arith.constant 0 : i32
    return %c0_i32, %c0_i32_0 : i32, i32
  }
  func.func @transform_9(%arg0: i32) -> (i32, i32) {
    %c0_i32 = arith.constant 0 : i32
    %c0_i32_0 = arith.constant 0 : i32
    %c0_i32_1 = arith.constant 0 : i32
    return %c0_i32, %c0_i32_0 : i32, i32
  }
  func.func @transform_10(%arg0: i32) -> (i32, i32) {
    %c0_i32 = arith.constant 0 : i32
    %c0_i32_0 = arith.constant 0 : i32
    %c0_i32_1 = arith.constant 0 : i32
    return %c0_i32, %c0_i32_0 : i32, i32
  }
  func.func @transform_11(%arg0: i32) -> (i32, i32) {
    %c0_i32 = arith.constant 0 : i32
    %c0_i32_0 = arith.constant 0 : i32
    return %arg0, %c0_i32 : i32, i32
  }
}

</mosaic_0001>

<llo_original>
// kernel: tpu_custom_call.1
$region0: #{tpu_custom_call.1}
  #allocation0 [shape = 'u32[]', space=smem, size = 0x4, offset = 0x4, fixed_abs, tag = 'smem constant byte address 0x4 - core index']
  #allocation1 [shape = 'u32[144,128]{1,0:T(1,128)}', space=vmem, size = 0x12000, scoped, tag = 'internal scratch']
  %s0 = inlined_call_operand.vmem [shape: f32[8,64], index: 0, kind: input, shape index: {}]
  %s1 = inlined_call_operand.vmem [shape: bf16[64,64], index: 1, kind: input, shape index: {}]
  %s2 = inlined_call_operand.vmem [shape: f32[1,64], index: 2, kind: input, shape index: {}]
  %s3 = inlined_call_operand.vmem [shape: bf16[64,32], index: 3, kind: input, shape index: {}]
  %s4 = inlined_call_operand.hbm [shape: f32[1,32], index: 4, kind: input, shape index: {}]
  %s5 = inlined_call_operand.vmem [shape: bf16[32,32], index: 5, kind: input, shape index: {}]
  %s6 = inlined_call_operand.vmem [shape: f32[1,32], index: 6, kind: input, shape index: {}]
  %s7 = inlined_call_operand.vmem [shape: bf16[32,16], index: 7, kind: input, shape index: {}]
  %s8 = inlined_call_operand.vmem [shape: f32[1,16], index: 8, kind: input, shape index: {}]
  %s9 = inlined_call_operand.vmem [shape: bf16[16,16], index: 9, kind: input, shape index: {}]
  %s10 = inlined_call_operand.vmem [shape: f32[1,16], index: 10, kind: input, shape index: {}]
  %s11 = inlined_call_operand.hbm [shape: bf16[8,16], index: 11, kind: output, shape index: {}]
  %s12 = sld [smem:[#allocation0]]
  $region58: #{tpu_custom_call.1} parent=0
    _
  %s14 = ssub.s32 1, %s12
  %s15 = scalar_select 0, %s14, %s12
  $region1: #{tpu_custom_call.1} parent=0
    #allocation2 [shape = 'u8[512]{0}', space=vmem, size = 0x400, scoped, tag = 'input window, operand 4, single buffered']
    #allocation3 [shape = 's32[1]{0}', space=sflag, size = 0x4, scoped, tag = 'scoped memory for tpu_custom_call.1']
    #allocation4 [shape = 's32[1]{0}', space=sflag, size = 0x4, scoped, tag = 'scoped memory for tpu_custom_call.1']
    #allocation5 [shape = 'u8[2048]{0}', space=vmem, size = 0x800, scoped, tag = 'output window, operand 0, single buffered']
    %16 = vsyncpa [#allocation3], 0
    %17 = vsyncpa [#allocation4], 0
    // Predicated region
    $region2: #{tpu_custom_call.1} parent=1 // pred_check
      _
    $region3: #{tpu_custom_call.1} parent=1 // pred_check_branch
      %19 = sbr.rel (0) target = $region5
    $region4: #{tpu_custom_call.1} parent=1 // pred_region
      _
    $region5: #{tpu_custom_call.1} parent=1 // pred_fallthru
      _
    // Predicated region
    $region6: #{tpu_custom_call.1} parent=1 // pred_check
      _
    $region7: #{tpu_custom_call.1} parent=1 // pred_check_branch
      %21 = sbr.rel (0) target = $region9
    $region8: #{tpu_custom_call.1} parent=1 // pred_region
      _
    $region9: #{tpu_custom_call.1} parent=1 // pred_fallthru
      _
    // Predicated region
    $region10: #{tpu_custom_call.1} parent=1 // pred_check
      _
    $region11: #{tpu_custom_call.1} parent=1 // pred_check_branch
      %23 = sbr.rel (0) target = $region13
    $region12: #{tpu_custom_call.1} parent=1 // pred_region
      _
    $region13: #{tpu_custom_call.1} parent=1 // pred_fallthru
      _
    // Predicated region
    $region14: #{tpu_custom_call.1} parent=1 // pred_check
      _
    $region15: #{tpu_custom_call.1} parent=1 // pred_check_branch
      %25 = sbr.rel (0) target = $region17
    $region16: #{tpu_custom_call.1} parent=1 // pred_region
      _
    $region17: #{tpu_custom_call.1} parent=1 // pred_fallthru
      _
    // Predicated region
    $region18: #{tpu_custom_call.1} parent=1 // pred_check
      _
    $region19: #{tpu_custom_call.1} parent=1 // pred_check_branch
      %27 = sbr.rel (0) target = $region21
    $region20: #{tpu_custom_call.1} parent=1 // pred_region
      %s29 = ssub.s32 16, 16
      %30 = vsyncadd [#allocation3], %s29
      %s32 = sshll.u32 [#allocation2], 4
      %s33 = int_to_ptr.vmem [resolvable:$true] %s32
      %35 = dma.hbm_to_vmem [thread:$0]  %s4, 16, %s33, [#allocation3]
    $region21: #{tpu_custom_call.1} parent=1 // pred_fallthru
      _
    // Predicated region
    $region22: #{tpu_custom_call.1} parent=1 // pred_check
      _
    $region23: #{tpu_custom_call.1} parent=1 // pred_check_branch
      %37 = sbr.rel (0) target = $region25
    $region24: #{tpu_custom_call.1} parent=1 // pred_region
      _
    $region25: #{tpu_custom_call.1} parent=1 // pred_fallthru
      _
    // Predicated region
    $region26: #{tpu_custom_call.1} parent=1 // pred_check
      _
    $region27: #{tpu_custom_call.1} parent=1 // pred_check_branch
      %39 = sbr.rel (0) target = $region29
    $region28: #{tpu_custom_call.1} parent=1 // pred_region
      _
    $region29: #{tpu_custom_call.1} parent=1 // pred_fallthru
      _
    // Predicated region
    $region30: #{tpu_custom_call.1} parent=1 // pred_check
      _
    $region31: #{tpu_custom_call.1} parent=1 // pred_check_branch
      %41 = sbr.rel (0) target = $region33
    $region32: #{tpu_custom_call.1} parent=1 // pred_region
      _
    $region33: #{tpu_custom_call.1} parent=1 // pred_fallthru
      _
    // Predicated region
    $region34: #{tpu_custom_call.1} parent=1 // pred_check
      _
    $region35: #{tpu_custom_call.1} parent=1 // pred_check_branch
      %43 = sbr.rel (0) target = $region37
    $region36: #{tpu_custom_call.1} parent=1 // pred_region
      _
    $region37: #{tpu_custom_call.1} parent=1 // pred_fallthru
      _
    // Predicated region
    $region38: #{tpu_custom_call.1} parent=1 // pred_check
      _
    $region39: #{tpu_custom_call.1} parent=1 // pred_check_branch
      %45 = sbr.rel (0) target = $region41
    $region40: #{tpu_custom_call.1} parent=1 // pred_region
      _
    $region41: #{tpu_custom_call.1} parent=1 // pred_fallthru
      _
    // Predicated region
    $region42: #{tpu_custom_call.1} parent=1 // pred_check
      _
    $region43: #{tpu_custom_call.1} parent=1 // pred_check_branch
      %47 = sbr.rel (0) target = $region45
    $region44: #{tpu_custom_call.1} parent=1 // pred_region
      _
    $region45: #{tpu_custom_call.1} parent=1 // pred_fallthru
      _
    // Predicated region
    $region46: #{tpu_custom_call.1} parent=1 // pred_check
      _
    $region47: #{tpu_custom_call.1} parent=1 // pred_check_branch
      %49 = sbr.rel (0) target = $region49
    $region48: #{tpu_custom_call.1} parent=1 // pred_region
      %50 = dma.done [#allocation3], 16
    $region49: #{tpu_custom_call.1} parent=1 // pred_fallthru
      _
    %v52 = vld [vmem:[%s0] sm:$0xff]
    %v53 = vpack.c.bf16 %v52, %v52
    %v54 = vld [vmem:[%s1] sm:$0xf]
    %v55 = vld [vmem:[%s1 + $0x4] sm:$0xf]
    %v56 = vld [vmem:[%s1 + $0x8] sm:$0xf]
    %v57 = vld [vmem:[%s1 + $0xc] sm:$0xf]
    %v58 = vld [vmem:[%s1 + $0x10] sm:$0xf]
    %v59 = vld [vmem:[%s1 + $0x14] sm:$0xf]
    %v60 = vld [vmem:[%s1 + $0x18] sm:$0xf]
    %v61 = vld [vmem:[%s1 + $0x1c] sm:$0xf]
    %v62 = vld [vmem:[%s2] sm:$0x1]
    %v64 = vlaneseq
    %v65 = vshrl.u32 %v64, 7
    %v66 = vsub.s32 0, %v65
    %v67 = vrot.slane %v62, %v66
    %v77 = vunpack.c.l.b16 %v54
    %v78 = vunpack.c.l.b16 %v55
    %v79 = vunpack.c.l.b16 %v56
    %v80 = vunpack.c.l.b16 %v57
    %v81 = vunpack.c.l.b16 %v58
    %v82 = vunpack.c.l.b16 %v59
    %v83 = vunpack.c.l.b16 %v60
    %v84 = vunpack.c.l.b16 %v61
    %v85 = vpack.c.b16 %v78, %v77
    %v86 = vpack.c.b16 %v80, %v79
    %v87 = vpack.c.b16 %v82, %v81
    %v88 = vpack.c.b16 %v84, %v83
    %vm93 = vcmask 523264
    %v95 = vsel %vm93, %v53, 0
    %97 = vmatprep.subr.bf16.mxu0 0
    %98 = vmatpush1.bf16.msra.mxu0 0
    %99 = vmatprep.subr.bf16.mxu0 0
    %100 = vmatpush1.bf16.msra.mxu0 0
    %101 = vmatprep.subr.bf16.mxu0 0
    %102 = vmatpush1.bf16.msra.mxu0 0
    %103 = vmatprep.subr.bf16.mxu0 0
    %104 = vmatpush1.bf16.msra.mxu0 0
    %105 = vmatprep.subr.bf16.mxu0 0
    %106 = vmatpush1.bf16.msra.mxu0 %v88
    %107 = vmatprep.subr.bf16.mxu0 0
    %108 = vmatpush1.bf16.msra.mxu0 %v87
    %109 = vmatprep.subr.bf16.mxu0 0
    %110 = vmatpush1.bf16.msra.mxu0 %v86
    %111 = vmatprep.subr.bf16.mxu0 0
    %112 = vmatpush1.bf16.msra.mxu0 %v85
    %113 = vmatprep.subr.bf16.mxu0 0
    %114 = vmatpush2.bf16.msra.mxu0 0
    %115 = vmatprep.subr.bf16.mxu0 0
    %116 = vmatpush2.bf16.msra.mxu0 0
    %117 = vmatprep.subr.bf16.mxu0 0
    %118 = vmatpush2.bf16.msra.mxu0 0
    %119 = vmatprep.subr.bf16.mxu0 0
    %120 = vmatpush2.bf16.msra.mxu0 0
    %121 = vmatprep.subr.bf16.mxu0 0
    %122 = vmatpush2.bf16.msra.mxu0 0
    %123 = vmatprep.subr.bf16.mxu0 0
    %124 = vmatpush2.bf16.msra.mxu0 0
    %125 = vmatprep.subr.bf16.mxu0 0
    %126 = vmatpush2.bf16.msra.mxu0 0
    %127 = vmatprep.subr.bf16.mxu0 0
    %128 = vmatpush2.bf16.msra.mxu0 0
    %129 = vmatprep.mubr.bf16.mxu0 0
    %130 = vmatmul.mubr.bf16.gmra.mxu0 %v95
    %v131 = vpop.f32.mrf.mxu0
    %v132 = vadd.f32 %v67, %v131
    %v133 = vpop.f32.mrf.mxu0
    %v134 = vpop.f32.mrf.mxu0
    %v135 = vpop.f32.mrf.mxu0
    %136 = vdwg.mxu0
    %v137 = vmax.f32 %v132, 0.0
    %v138 = vpack.c.bf16 %v137, %v137
    %v139 = vld [vmem:[%s3] sm:$0xf]
    %v140 = vld [vmem:[%s3 + $0x4] sm:$0xf]
    %v141 = vld [vmem:[%s3 + $0x8] sm:$0xf]
    %v142 = vld [vmem:[%s3 + $0xc] sm:$0xf]
    %v143 = vld [vmem:[%s3 + $0x10] sm:$0xf]
    %v144 = vld [vmem:[%s3 + $0x14] sm:$0xf]
    %v145 = vld [vmem:[%s3 + $0x18] sm:$0xf]
    %v146 = vld [vmem:[%s3 + $0x1c] sm:$0xf]
    %v147 = vld [vmem:[#allocation2] sm:$0x1]
    %v149 = vlaneseq
    %v150 = vshrl.u32 %v149, 7
    %v151 = vsub.s32 0, %v150
    %v152 = vrot.slane %v147, %v151
    %v162 = vunpack.c.l.b16 %v139
    %v163 = vunpack.c.l.b16 %v140
    %v164 = vunpack.c.l.b16 %v141
    %v165 = vunpack.c.l.b16 %v142
    %v166 = vunpack.c.l.b16 %v143
    %v167 = vunpack.c.l.b16 %v144
    %v168 = vunpack.c.l.b16 %v145
    %v169 = vunpack.c.l.b16 %v146
    %v170 = vpack.c.b16 %v163, %v162
    %v171 = vpack.c.b16 %v165, %v164
    %v172 = vpack.c.b16 %v167, %v166
    %v173 = vpack.c.b16 %v169, %v168
    %v179 = vsel %vm93, %v138, 0
    %181 = vmatprep.subr.bf16.mxu0 0
    %182 = vmatpush1.bf16.msra.mxu0 0
    %183 = vmatprep.subr.bf16.mxu0 0
    %184 = vmatpush1.bf16.msra.mxu0 0
    %185 = vmatprep.subr.bf16.mxu0 0
    %186 = vmatpush1.bf16.msra.mxu0 0
    %187 = vmatprep.subr.bf16.mxu0 0
    %188 = vmatpush1.bf16.msra.mxu0 0
    %189 = vmatprep.subr.bf16.mxu0 0
    %190 = vmatpush1.bf16.msra.mxu0 %v173
    %191 = vmatprep.subr.bf16.mxu0 0
    %192 = vmatpush1.bf16.msra.mxu0 %v172
    %193 = vmatprep.subr.bf16.mxu0 0
    %194 = vmatpush1.bf16.msra.mxu0 %v171
    %195 = vmatprep.subr.bf16.mxu0 0
    %196 = vmatpush1.bf16.msra.mxu0 %v170
    %197 = vmatprep.subr.bf16.mxu0 0
    %198 = vmatpush2.bf16.msra.mxu0 0
    %199 = vmatprep.subr.bf16.mxu0 0
    %200 = vmatpush2.bf16.msra.mxu0 0
    %201 = vmatprep.subr.bf16.mxu0 0
    %202 = vmatpush2.bf16.msra.mxu0 0
    %203 = vmatprep.subr.bf16.mxu0 0
    %204 = vmatpush2.bf16.msra.mxu0 0
    %205 = vmatprep.subr.bf16.mxu0 0
    %206 = vmatpush2.bf16.msra.mxu0 0
    %207 = vmatprep.subr.bf16.mxu0 0
    %208 = vmatpush2.bf16.msra.mxu0 0
    %209 = vmatprep.subr.bf16.mxu0 0
    %210 = vmatpush2.bf16.msra.mxu0 0
    %211 = vmatprep.subr.bf16.mxu0 0
    %212 = vmatpush2.bf16.msra.mxu0 0
    %213 = vmatprep.mubr.bf16.mxu0 0
    %214 = vmatmul.mubr.bf16.gmra.mxu0 %v179
    %v215 = vpop.f32.mrf.mxu0
    %v216 = vadd.f32 %v152, %v215
    %v217 = vpop.f32.mrf.mxu0
    %v218 = vpop.f32.mrf.mxu0
    %v219 = vpop.f32.mrf.mxu0
    %220 = vdwg.mxu0
    %v221 = vmax.f32 %v216, 0.0
    %v222 = vpack.c.bf16 %v221, %v221
    %v223 = vld [vmem:[%s5] sm:$0xf]
    %v224 = vld [vmem:[%s5 + $0x4] sm:$0xf]
    %v225 = vld [vmem:[%s5 + $0x8] sm:$0xf]
    %v226 = vld [vmem:[%s5 + $0xc] sm:$0xf]
    %v227 = vld [vmem:[%s6] sm:$0x1]
    %v229 = vlaneseq
    %v230 = vshrl.u32 %v229, 7
    %v231 = vsub.s32 0, %v230
    %v232 = vrot.slane %v227, %v231
    %v238 = vunpack.c.l.b16 %v223
    %v239 = vunpack.c.l.b16 %v224
    %v240 = vunpack.c.l.b16 %v225
    %v241 = vunpack.c.l.b16 %v226
    %v242 = vpack.c.b16 %v239, %v238
    %v243 = vpack.c.b16 %v241, %v240
    %vm246 = vcmask 261120
    %v248 = vsel %vm246, %v222, 0
    %250 = vmatprep.subr.bf16.mxu0 0
    %251 = vmatpush1.bf16.msra.mxu0 0
    %252 = vmatprep.subr.bf16.mxu0 0
    %253 = vmatpush1.bf16.msra.mxu0 0
    %254 = vmatprep.subr.bf16.mxu0 0
    %255 = vmatpush1.bf16.msra.mxu0 0
    %256 = vmatprep.subr.bf16.mxu0 0
    %257 = vmatpush1.bf16.msra.mxu0 0
    %258 = vmatprep.subr.bf16.mxu0 0
    %259 = vmatpush1.bf16.msra.mxu0 0
    %260 = vmatprep.subr.bf16.mxu0 0
    %261 = vmatpush1.bf16.msra.mxu0 0
    %262 = vmatprep.subr.bf16.mxu0 0
    %263 = vmatpush1.bf16.msra.mxu0 %v243
    %264 = vmatprep.subr.bf16.mxu0 0
    %265 = vmatpush1.bf16.msra.mxu0 %v242
    %266 = vmatprep.subr.bf16.mxu0 0
    %267 = vmatpush2.bf16.msra.mxu0 0
    %268 = vmatprep.subr.bf16.mxu0 0
    %269 = vmatpush2.bf16.msra.mxu0 0
    %270 = vmatprep.subr.bf16.mxu0 0
    %271 = vmatpush2.bf16.msra.mxu0 0
    %272 = vmatprep.subr.bf16.mxu0 0
    %273 = vmatpush2.bf16.msra.mxu0 0
    %274 = vmatprep.subr.bf16.mxu0 0
    %275 = vmatpush2.bf16.msra.mxu0 0
    %276 = vmatprep.subr.bf16.mxu0 0
    %277 = vmatpush2.bf16.msra.mxu0 0
    %278 = vmatprep.subr.bf16.mxu0 0
    %279 = vmatpush2.bf16.msra.mxu0 0
    %280 = vmatprep.subr.bf16.mxu0 0
    %281 = vmatpush2.bf16.msra.mxu0 0
    %282 = vmatprep.mubr.bf16.mxu0 0
    %283 = vmatmul.mubr.bf16.gmra.mxu0 %v248
    %v284 = vpop.f32.mrf.mxu0
    %v285 = vadd.f32 %v232, %v284
    %v286 = vpop.f32.mrf.mxu0
    %v287 = vpop.f32.mrf.mxu0
    %v288 = vpop.f32.mrf.mxu0
    %289 = vdwg.mxu0
    %v290 = vmax.f32 %v285, 0.0
    %v291 = vpack.c.bf16 %v290, %v290
    %v292 = vld [vmem:[%s7] sm:$0xf]
    %v293 = vld [vmem:[%s7 + $0x4] sm:$0xf]
    %v294 = vld [vmem:[%s7 + $0x8] sm:$0xf]
    %v295 = vld [vmem:[%s7 + $0xc] sm:$0xf]
    %v296 = vld [vmem:[%s8] sm:$0x1]
    %v298 = vlaneseq
    %v299 = vshrl.u32 %v298, 7
    %v300 = vsub.s32 0, %v299
    %v301 = vrot.slane %v296, %v300
    %v307 = vunpack.c.l.b16 %v292
    %v308 = vunpack.c.l.b16 %v293
    %v309 = vunpack.c.l.b16 %v294
    %v310 = vunpack.c.l.b16 %v295
    %v311 = vpack.c.b16 %v308, %v307
    %v312 = vpack.c.b16 %v310, %v309
    %v316 = vsel %vm246, %v291, 0
    %318 = vmatprep.subr.bf16.mxu0 0
    %319 = vmatpush1.bf16.msra.mxu0 0
    %320 = vmatprep.subr.bf16.mxu0 0
    %321 = vmatpush1.bf16.msra.mxu0 0
    %322 = vmatprep.subr.bf16.mxu0 0
    %323 = vmatpush1.bf16.msra.mxu0 0
    %324 = vmatprep.subr.bf16.mxu0 0
    %325 = vmatpush1.bf16.msra.mxu0 0
    %326 = vmatprep.subr.bf16.mxu0 0
    %327 = vmatpush1.bf16.msra.mxu0 0
    %328 = vmatprep.subr.bf16.mxu0 0
    %329 = vmatpush1.bf16.msra.mxu0 0
    %330 = vmatprep.subr.bf16.mxu0 0
    %331 = vmatpush1.bf16.msra.mxu0 %v312
    %332 = vmatprep.subr.bf16.mxu0 0
    %333 = vmatpush1.bf16.msra.mxu0 %v311
    %334 = vmatprep.subr.bf16.mxu0 0
    %335 = vmatpush2.bf16.msra.mxu0 0
    %336 = vmatprep.subr.bf16.mxu0 0
    %337 = vmatpush2.bf16.msra.mxu0 0
    %338 = vmatprep.subr.bf16.mxu0 0
    %339 = vmatpush2.bf16.msra.mxu0 0
    %340 = vmatprep.subr.bf16.mxu0 0
    %341 = vmatpush2.bf16.msra.mxu0 0
    %342 = vmatprep.subr.bf16.mxu0 0
    %343 = vmatpush2.bf16.msra.mxu0 0
    %344 = vmatprep.subr.bf16.mxu0 0
    %345 = vmatpush2.bf16.msra.mxu0 0
    %346 = vmatprep.subr.bf16.mxu0 0
    %347 = vmatpush2.bf16.msra.mxu0 0
    %348 = vmatprep.subr.bf16.mxu0 0
    %349 = vmatpush2.bf16.msra.mxu0 0
    %350 = vmatprep.mubr.bf16.mxu0 0
    %351 = vmatmul.mubr.bf16.gmra.mxu0 %v316
    %v352 = vpop.f32.mrf.mxu0
    %v353 = vadd.f32 %v301, %v352
    %v354 = vpop.f32.mrf.mxu0
    %v355 = vpop.f32.mrf.mxu0
    %v356 = vpop.f32.mrf.mxu0
    %357 = vdwg.mxu0
    %v358 = vmax.f32 %v353, 0.0
    %v359 = vpack.c.bf16 %v358, %v358
    %v360 = vld [vmem:[%s9] sm:$0xf]
    %v361 = vld [vmem:[%s9 + $0x4] sm:$0xf]
    %v362 = vld [vmem:[%s10] sm:$0x1]
    %v364 = vlaneseq
    %v365 = vshrl.u32 %v364, 7
    %v366 = vsub.s32 0, %v365
    %v367 = vrot.slane %v362, %v366
    %v371 = vunpack.c.l.b16 %v360
    %v372 = vunpack.c.l.b16 %v361
    %v373 = vpack.c.b16 %v372, %v371
    %vm375 = vcmask 130048
    %v377 = vsel %vm375, %v359, 0
    %379 = vmatprep.subr.bf16.mxu0 0
    %380 = vmatpush1.bf16.msra.mxu0 0
    %381 = vmatprep.subr.bf16.mxu0 0
    %382 = vmatpush1.bf16.msra.mxu0 0
    %383 = vmatprep.subr.bf16.mxu0 0
    %384 = vmatpush1.bf16.msra.mxu0 0
    %385 = vmatprep.subr.bf16.mxu0 0
    %386 = vmatpush1.bf16.msra.mxu0 0
    %387 = vmatprep.subr.bf16.mxu0 0
    %388 = vmatpush1.bf16.msra.mxu0 0
    %389 = vmatprep.subr.bf16.mxu0 0
    %390 = vmatpush1.bf16.msra.mxu0 0
    %391 = vmatprep.subr.bf16.mxu0 0
    %392 = vmatpush1.bf16.msra.mxu0 0
    %393 = vmatprep.subr.bf16.mxu0 0
    %394 = vmatpush1.bf16.msra.mxu0 %v373
    %395 = vmatprep.subr.bf16.mxu0 0
    %396 = vmatpush2.bf16.msra.mxu0 0
    %397 = vmatprep.subr.bf16.mxu0 0
    %398 = vmatpush2.bf16.msra.mxu0 0
    %399 = vmatprep.subr.bf16.mxu0 0
    %400 = vmatpush2.bf16.msra.mxu0 0
    %401 = vmatprep.subr.bf16.mxu0 0
    %402 = vmatpush2.bf16.msra.mxu0 0
    %403 = vmatprep.subr.bf16.mxu0 0
    %404 = vmatpush2.bf16.msra.mxu0 0
    %405 = vmatprep.subr.bf16.mxu0 0
    %406 = vmatpush2.bf16.msra.mxu0 0
    %407 = vmatprep.subr.bf16.mxu0 0
    %408 = vmatpush2.bf16.msra.mxu0 0
    %409 = vmatprep.subr.bf16.mxu0 0
    %410 = vmatpush2.bf16.msra.mxu0 0
    %411 = vmatprep.mubr.bf16.mxu0 0
    %412 = vmatmul.mubr.bf16.gmra.mxu0 %v377
    %v413 = vpop.f32.mrf.mxu0
    %v414 = vadd.f32 %v367, %v413
    %v415 = vpop.f32.mrf.mxu0
    %v416 = vpop.f32.mrf.mxu0
    %v417 = vpop.f32.mrf.mxu0
    %418 = vdwg.mxu0
    %v419 = vpack.c.bf16 %v414, %v414
    %vm420 = vcmask 125952
    %421 = vst.msk [vmem:[#allocation5] sm:$0xf] %vm420, %v419
    // Predicated region
    $region50: #{tpu_custom_call.1} parent=1 // pred_check
      _
    $region51: #{tpu_custom_call.1} parent=1 // pred_check_branch
      %423 = sbr.rel (0) target = $region53
    $region52: #{tpu_custom_call.1} parent=1 // pred_region
      %s425 = ssub.s32 64, 64
      %426 = vsyncadd [#allocation4], %s425
      %s428 = sshll.u32 [#allocation5], 4
      %s429 = int_to_ptr.vmem [resolvable:$true] %s428
      %431 = dma.vmem_to_hbm [thread:$0]  %s429, 64, %s11, [#allocation4]
    $region53: #{tpu_custom_call.1} parent=1 // pred_fallthru
      _
    // Predicated region
    $region54: #{tpu_custom_call.1} parent=1 // pred_check
      _
    $region55: #{tpu_custom_call.1} parent=1 // pred_check_branch
      %433 = sbr.rel (0) target = $region57
    $region56: #{tpu_custom_call.1} parent=1 // pred_region
      %434 = dma.done [#allocation4], 64
    $region57: #{tpu_custom_call.1} parent=1 // pred_fallthru
      _
    %435 = vsyncpa [#allocation3], 1
    %436 = vsyncpa [#allocation4], 1

</llo_original>
